<compile_context>
chip_gen: v5e
topology: v5e:2x2
jax: 0.10.0
libtpu: 0.0.40
codegen_flags: <defaults>
</compile_context>

<pallas_src>
import jax
import jax.numpy as jnp
from jax.experimental import pallas as pl
from jax.experimental.pallas import tpu as pltpu


def char_embedding_kernel(idx_ref, table_ref, out_ref):
    # idx_ref:   [TR, PACK] int32   packed char ids; column j is pre-offset by j*V
    # table_ref: [PACK*V, PACK*E]   block-diagonal replicated embedding table (compute dtype)
    # out_ref:   [TR, PACK*E]       output tile (bf16 or f32)
    tr, pack = idx_ref.shape
    k = table_ref.shape[0]
    idx = idx_ref[...]
    kiota = jax.lax.broadcasted_iota(jnp.int32, (tr, k), 1)
    # Column ranges [j*V, (j+1)*V) are disjoint, so OR == sum.  Accumulate as booleans and
    # cast to the matmul dtype once (saves (PACK-1) casts and the bf16 adds on the VPU).
    # Out-of-range ids -> all-zero one-hot row -> zero embedding (nn.Embedding would raise;
    # benign, documented semantic difference).
    hit = kiota == idx[:, 0:1]
    for j in range(1, pack):
        hit = jnp.logical_or(hit, kiota == idx[:, j : j + 1])
    one_hot = hit.astype(table_ref.dtype)
    out_ref[...] = jnp.dot(
        one_hot, table_ref[...], preferred_element_type=jnp.float32
    ).astype(out_ref.dtype)


def char_embedding(inputs, table, *, row_tile=4096, compute_dtype=jnp.bfloat16,
                   out_dtype=None):
    """inputs: [sent_length, max_word_length] int ids; table: [V, E] float32.

    Returns [sent_length, max_word_length, E], matching nn.Embedding(padding_idx=0) in eval
    mode / dropout=0.  Default path uses bf16 MXU operands AND bf16 output (row selection is
    exact; stored values round to bf16).  compute_dtype=jnp.float32 gives an f32 output that
    is bit-identical to the f32 gather.
    """
    s, w = inputs.shape
    v, e = table.shape
    n = s * w

    compute_dtype = jnp.dtype(compute_dtype)
    if out_dtype is None:
        # bf16 compute already rounds values to bf16, so writing f32 would only re-widen
        # rounded data; bf16 output halves HBM writeback (the dominant traffic).
        out_dtype = jnp.bfloat16 if compute_dtype == jnp.dtype(jnp.bfloat16) else jnp.float32
    out_dtype = jnp.dtype(out_dtype)

    # Pack PACK logical rows per physical row so the output last dim is ~128 lanes
    # (unmasked 128-lane stores, K=PACK*V MXU contraction).
    pack = max(1, 128 // e)
    # 16-sublane granularity keeps block shapes legal for both bf16 (16,128) and f32 (8,128)
    # output tiling.
    row_unit = 16 * pack

    n_units = pl.cdiv(max(n, 1), row_unit)
    units_per_tile = max(1, min(max(row_tile, row_unit) // row_unit, n_units))
    if n_units >= 2:
        # Never collapse to a single grid step when there is enough work to split: v7x has
        # two TensorCores and "parallel" can only shard a grid axis with > 1 step.
        units_per_tile = min(units_per_tile, pl.cdiv(n_units, 2))
    rt = units_per_tile * row_unit          # logical rows per grid step
    grid = pl.cdiv(n, rt)
    n_pad = grid * rt

    idx_flat = inputs.reshape(n).astype(jnp.int32)
    if n_pad != n:
        # Index 0 is always a valid row (it is the padding row); padded rows are sliced off.
        idx_flat = jnp.pad(idx_flat, (0, n_pad - n))
    # Column j of a packed row holds logical row r*pack + j, pre-offset into [j*V, (j+1)*V).
    idx_packed = idx_flat.reshape(n_pad // pack, pack) + (
        jnp.arange(pack, dtype=jnp.int32) * v
    )

    # Block-diagonal replicated table: diagonal block j is the table itself.
    packed_table = jnp.kron(
        jnp.eye(pack, dtype=compute_dtype), table.astype(compute_dtype)
    )

    tr = rt // pack                         # physical rows per grid step (<= ~1024)
    out_packed = pl.pallas_call(
        char_embedding_kernel,
        out_shape=jax.ShapeDtypeStruct((n_pad // pack, pack * e), out_dtype),
        grid_spec=pltpu.PrefetchScalarGridSpec(
            num_scalar_prefetch=0,
            grid=(grid,),
            in_specs=[
                # Packed index tile.  Last dim equals the full array dim (PACK), so the HBM
                # read is contiguous; VMEM lane-padding stays ~0.5 MiB/buffer at tr=1024.
                pl.BlockSpec((tr, pack), lambda i: (i, 0)),
                # Full replicated table, constant block index: DMA'd once, kept resident.
                # Only 32 KiB at V=E=32; for large PACK^2*V*E single-buffer it or switch to
                # the gather path (see TODO at top).
                pl.BlockSpec((pack * v, pack * e), lambda i: (0, 0)),
            ],
            out_specs=pl.BlockSpec((tr, pack * e), lambda i: (i, 0)),
        ),
        compiler_params=pltpu.CompilerParams(
            dimension_semantics=("parallel",)   # shard the row steps across v7x's 2 TCs
        ),
    )(idx_packed, packed_table)

    # [n_pad/pack, pack*E] -> [n_pad, E] is a free row-major view; drop the padding rows.
    out_flat = out_packed.reshape(n_pad, e)[:n]
    return out_flat.reshape(s, w, e)


def init_char_embedding_params(key, n_chars, embedding_size, padding_idx=0):
    # nn.Embedding default init: N(0, 1); row `padding_idx` is zeroed.
    table = jax.random.normal(key, (n_chars, embedding_size), dtype=jnp.float32)
    table = table.at[padding_idx].set(0.0)
    return table


if __name__ == "__main__":
    n_chars = 32          # vocab size V
    embedding_size = 32   # E
    sent_length = 8
    max_word_length = 16  # N = 128 flattened rows -> 2 grid steps (one per v7x TC)

    key = jax.random.PRNGKey(0)
    k_tab, k_idx, k_idx2 = jax.random.split(key, 3)

    table = init_char_embedding_params(k_tab, n_chars, embedding_size, padding_idx=0)
    inputs = jax.random.randint(
        k_idx, (sent_length, max_word_length), minval=0, maxval=n_chars, dtype=jnp.int32
    )

    # Default fast path: bf16 MXU operands + bf16 output (row selection exact; stored
    # embedding values round to bf16).
    out = jax.block_until_ready(char_embedding(inputs, table))
    assert out.shape == (sent_length, max_word_length, embedding_size)
    assert out.dtype == jnp.dtype(jnp.bfloat16)
    ref_bf16 = jnp.take(table.astype(jnp.bfloat16).astype(jnp.float32), inputs, axis=0)
    assert jnp.allclose(out.astype(jnp.float32), ref_bf16, atol=1e-6), \
        "bf16 path mismatch vs gather reference"

    # f32 path reproduces nn.Embedding(padding_idx=0) exactly.
    out_f32 = jax.block_until_ready(
        char_embedding(inputs, table, compute_dtype=jnp.float32)
    )
    ref_f32 = jnp.take(table, inputs, axis=0)
    assert out_f32.dtype == jnp.dtype(jnp.float32)
    assert jnp.allclose(out_f32, ref_f32, atol=1e-6), "f32 path mismatch vs gather reference"

    # Ragged shape (N = 35, not a multiple of the tile or of PACK) exercises the padding path.
    inputs2 = jax.random.randint(k_idx2, (5, 7), minval=0, maxval=n_chars, dtype=jnp.int32)
    out2 = jax.block_until_ready(
        char_embedding(inputs2, table, compute_dtype=jnp.float32)
    )
    ref2 = jnp.take(table, inputs2, axis=0)
    assert out2.shape == (5, 7, embedding_size)
    assert jnp.allclose(out2, ref2, atol=1e-6), "padded path mismatch vs gather reference"

    print("KERNEL_OK")
</pallas_src>

<mosaic_0001>
module attributes {stable_mosaic.version = 11 : i64} {
  func.func @char_embedding_kernel(%arg0: i32, %arg1: memref<16x4xi32, #tpu.memory_space<vmem>>, %arg2: memref<128x128xbf16, #tpu.memory_space<vmem>>, %arg3: memref<16x128xbf16, #tpu.memory_space<vmem>>) attributes {dimension_semantics = [#tpu.dimension_semantics<parallel>], iteration_bounds = array<i64: 2>, scalar_prefetch = 0 : i64, scratch_operands = 0 : i64, tpu.core_type = #tpu.core_type<tc>, window_params = [{transform_indices = @transform_0, window_bounds = array<i64: 16, 4>}, {pipeline_mode = #tpu.pipeline_mode<synchronous>, transform_indices = @transform_1, window_bounds = array<i64: 128, 128>}, {transform_indices = @transform_2, window_bounds = array<i64: 16, 128>}]} {
    %c0 = arith.constant 0 : index
    %c0_0 = arith.constant 0 : index
    %0 = vector.load %arg1[%c0, %c0_0] : memref<16x4xi32, #tpu.memory_space<vmem>>, vector<16x4xi32>
    %1 = tpu.iota {dimensions = array<i32: 1>} : vector<16x128xi32>
    %2 = vector.extract_strided_slice %0 {offsets = [0, 0], sizes = [16, 1], strides = [1, 1]} : vector<16x4xi32> to vector<16x1xi32>
    %3 = vector.broadcast %2 : vector<16x1xi32> to vector<16x128xi32>
    %4 = arith.cmpi eq, %1, %3 : vector<16x128xi32>
    %5 = vector.extract_strided_slice %0 {offsets = [0, 1], sizes = [16, 1], strides = [1, 1]} : vector<16x4xi32> to vector<16x1xi32>
    %6 = vector.broadcast %5 : vector<16x1xi32> to vector<16x128xi32>
    %7 = arith.cmpi eq, %1, %6 : vector<16x128xi32>
    %8 = arith.ori %4, %7 : vector<16x128xi1>
    %9 = vector.extract_strided_slice %0 {offsets = [0, 2], sizes = [16, 1], strides = [1, 1]} : vector<16x4xi32> to vector<16x1xi32>
    %10 = vector.broadcast %9 : vector<16x1xi32> to vector<16x128xi32>
    %11 = arith.cmpi eq, %1, %10 : vector<16x128xi32>
    %12 = arith.ori %8, %11 : vector<16x128xi1>
    %13 = vector.extract_strided_slice %0 {offsets = [0, 3], sizes = [16, 1], strides = [1, 1]} : vector<16x4xi32> to vector<16x1xi32>
    %14 = vector.broadcast %13 : vector<16x1xi32> to vector<16x128xi32>
    %15 = arith.cmpi eq, %1, %14 : vector<16x128xi32>
    %16 = arith.ori %12, %15 : vector<16x128xi1>
    %17 = arith.extui %16 : vector<16x128xi1> to vector<16x128xi32>
    %18 = arith.sitofp %17 : vector<16x128xi32> to vector<16x128xf32>
    %19 = arith.truncf %18 : vector<16x128xf32> to vector<16x128xbf16>
    %c0_1 = arith.constant 0 : index
    %c0_2 = arith.constant 0 : index
    %20 = vector.load %arg2[%c0_1, %c0_2] : memref<128x128xbf16, #tpu.memory_space<vmem>>, vector<128x128xbf16>
    %cst = arith.constant dense<0.000000e+00> : vector<16x128xf32>
    %21 = tpu.matmul %19, %20, %cst {dimension_numbers = #tpu.dot_dimension_numbers<[1], [0], [0], [1], [0, 0, 1, 1], [], []>} : vector<16x128xbf16>, vector<128x128xbf16>, vector<16x128xf32> -> vector<16x128xf32>
    %22 = arith.truncf %21 : vector<16x128xf32> to vector<16x128xbf16>
    %c0_3 = arith.constant 0 : index
    %c0_4 = arith.constant 0 : index
    %23 = vector.load %arg3[%c0_3, %c0_4] : memref<16x128xbf16, #tpu.memory_space<vmem>>, vector<16x128xbf16>
    tpu.vector_store %arg3[%c0_3, %c0_4], %22 {strides = array<i32>} : memref<16x128xbf16, #tpu.memory_space<vmem>>, vector<16x128xbf16>,
    return
  }
  func.func @transform_0(%arg0: i32) -> (i32, i32) {
    %c0_i32 = arith.constant 0 : i32
    %c0_i32_0 = arith.constant 0 : i32
    return %arg0, %c0_i32 : i32, i32
  }
  func.func @transform_1(%arg0: i32) -> (i32, i32) {
    %c0_i32 = arith.constant 0 : i32
    %c0_i32_0 = arith.constant 0 : i32
    %c0_i32_1 = arith.constant 0 : i32
    return %c0_i32, %c0_i32_0 : i32, i32
  }
  func.func @transform_2(%arg0: i32) -> (i32, i32) {
    %c0_i32 = arith.constant 0 : i32
    %c0_i32_0 = arith.constant 0 : i32
    return %arg0, %c0_i32 : i32, i32
  }
}

</mosaic_0001>

<llo_original>
// kernel: tpu_custom_call.1
$region0: #{tpu_custom_call.1}
  #allocation0 [shape = 'u32[]', space=smem, size = 0x4, offset = 0x4, fixed_abs, tag = 'smem constant byte address 0x4 - core index']
  #allocation1 [shape = 'u32[72,128]{1,0:T(1,128)}', space=vmem, size = 0x9000, scoped, tag = 'internal scratch']
  %s0 = inlined_call_operand.vmem [shape: s32[32,4], index: 0, kind: input, shape index: {}]
  %s1 = inlined_call_operand.hbm [shape: bf16[128,128], index: 1, kind: input, shape index: {}]
  %s2 = inlined_call_operand.hbm [shape: bf16[32,128], index: 2, kind: output, shape index: {}]
  %s3 = sld [smem:[#allocation0]]
  $region45: #{tpu_custom_call.1} parent=0
    _
  %s5 = ssub.s32 1, %s3
  %s6 = scalar_select 0, %s5, %s3
  $region1: #{tpu_custom_call.1} parent=0
    #allocation2 [shape = 'u8[32768]{0}', space=vmem, size = 0x8000, scoped, tag = 'input window, operand 1, single buffered']
    #allocation3 [shape = 's32[2]{0}', space=sflag, size = 0x8, scoped, tag = 'scoped memory for tpu_custom_call.1']
    #allocation4 [shape = 's32[2]{0}', space=sflag, size = 0x8, scoped, tag = 'scoped memory for tpu_custom_call.1']
    #allocation5 [shape = 'u8[8192]{0}', space=vmem, size = 0x2000, scoped, tag = 'output window, operand 0']
    %7 = vsyncpa [#allocation3], 0
    %8 = vsyncpa [#allocation4], 0
    %s9 = scalar_lea.sflag [#allocation4], 1
    %10 = vsyncpa %s9, 0
    loop: start=0, step=1, limit=4
    $region2: #{tpu_custom_call.1} parent=1 // loop_pre_header
      _
    $region3: #{tpu_custom_call.1} parent=1 // loop_header
      %s12 = sphi 0, %s16
      %p13 = scmp.ge.s32.totalorder %s12, 4
      %s22 = sphi 0, %s24
      %s25 = sphi 0, %s22
      %s26 = sphi 0, %s25
      %s42 = sphi 0, %s26
      %s46 = sphi 0, %s46
      %s48 = sphi 0, %s46
      %s49 = sphi 0, %s48
      %s63 = sphi 0, %s49
      %s69 = sphi 0, %s71
      %s72 = sphi 0, %s69
      %s73 = sphi 0, %s72
      %s89 = sphi 0, %s73
    $region4: #{tpu_custom_call.1} parent=1 // loop_header_branch
      %15 = sbr.rel (%p13) target = $region8
    $region5: #{tpu_custom_call.1} parent=1 // loop_body
      %s17 = ssub.s32 %s12, 1
      %s18 = ssub.s32 %s12, 2
      %s19 = sadd.s32 %s12, 1
      %s20 = ssub.s32 %s12, %s19
      %p21 = scmp.eq.s32.totalorder %s20, 0
      %s23 = sadd.s32 %s22, 1
      %s24 = scalar_select %p21, %s22, %s23
      %p27 = pneg %p21
      %p28 = scmp.eq.s32.totalorder %s12, 1
      %p29 = por %p27, %p28
      %p30 = scmp.ne.s32.totalorder %s22, %s25
      %p31 = scmp.eq.s32.totalorder %s12, 0
      %p32 = por %p30, %p31
      %p33 = scmp.ne.s32.totalorder %s22, %s25
      %p34 = scmp.eq.s32.totalorder %s17, 1
      %p35 = por %p33, %p34
      %p36 = scmp.ne.s32.totalorder %s25, %s26
      %p37 = scmp.eq.s32.totalorder %s17, 0
      %p38 = por %p36, %p37
      %p39 = scmp.ne.s32.totalorder %s25, %s26
      %p40 = scmp.eq.s32.totalorder %s18, 1
      %p41 = por %p39, %p40
      %p43 = scmp.ne.s32.totalorder %s26, %s42
      %p44 = scmp.eq.s32.totalorder %s18, 0
      %p45 = por %p43, %p44
      %s47 = sadd.s32 %s46, 1
      %p50 = scmp.eq.s32.totalorder %s12, 1
      %p51 = scmp.ne.s32.totalorder %s46, %s48
      %p52 = scmp.eq.s32.totalorder %s12, 0
      %p53 = por %p51, %p52
      %p54 = scmp.ne.s32.totalorder %s46, %s48
      %p55 = scmp.eq.s32.totalorder %s17, 1
      %p56 = por %p54, %p55
      %p57 = scmp.ne.s32.totalorder %s48, %s49
      %p58 = scmp.eq.s32.totalorder %s17, 0
      %p59 = por %p57, %p58
      %p60 = scmp.ne.s32.totalorder %s48, %s49
      %p61 = scmp.eq.s32.totalorder %s18, 1
      %p62 = por %p60, %p61
      %p64 = scmp.ne.s32.totalorder %s49, %s63
      %p65 = scmp.eq.s32.totalorder %s18, 0
      %p66 = por %p64, %p65
      %s67 = ssub.s32 %s12, %s19
      %p68 = scmp.eq.s32.totalorder %s67, 0
      %s70 = sadd.s32 %s69, 1
      %s71 = scalar_select %p68, %s69, %s70
      %p74 = pneg %p68
      %p75 = scmp.eq.s32.totalorder %s12, 1
      %p76 = por %p74, %p75
      %p77 = scmp.ne.s32.totalorder %s69, %s72
      %p78 = scmp.eq.s32.totalorder %s12, 0
      %p79 = por %p77, %p78
      %p80 = scmp.ne.s32.totalorder %s69, %s72
      %p81 = scmp.eq.s32.totalorder %s17, 1
      %p82 = por %p80, %p81
      %p83 = scmp.ne.s32.totalorder %s72, %s73
      %p84 = scmp.eq.s32.totalorder %s17, 0
      %p85 = por %p83, %p84
      %p86 = scmp.ne.s32.totalorder %s72, %s73
      %p87 = scmp.eq.s32.totalorder %s18, 1
      %p88 = por %p86, %p87
      %p90 = scmp.ne.s32.totalorder %s73, %s89
      %p91 = scmp.eq.s32.totalorder %s18, 0
      %p92 = por %p90, %p91
      %p93 = scmp.le.s32.totalorder 1, %s12
      %p94 = scmp.lt.s32.totalorder %s12, 3
      %p95 = pnand %p93, %p94
      %p96 = pneg %p95
      // Predicated region
      $region9: #{tpu_custom_call.1} parent=5 // pred_check
        _
      $region10: #{tpu_custom_call.1} parent=5 // pred_check_branch
        %98 = sbr.rel (%p95) target = $region12
      $region11: #{tpu_custom_call.1} parent=5 // pred_region
        %s99 = ssub.s32 %s12, 1
        // Predicated region
        $region13: #{tpu_custom_call.1} parent=11 // pred_check
          %p100 = pneg %p59
        $region14: #{tpu_custom_call.1} parent=11 // pred_check_branch
          %102 = sbr.rel (%p100) target = $region16
        $region15: #{tpu_custom_call.1} parent=11 // pred_region
          %104 = vsyncadd [#allocation3], 0
          %s105 = sshll.u32 %s1, 4
          %s106 = int_to_ptr.hbm [resolvable:$true] %s105
          %s107 = sshll.u32 [#allocation2], 4
          %s108 = int_to_ptr.vmem [resolvable:$true] %s107
          %113 = dma.hbm_to_vmem [thread:$0]  %s106, 1024, %s108, [#allocation3], 64, 64, 4
        $region16: #{tpu_custom_call.1} parent=11 // pred_fallthru
          _
      $region12: #{tpu_custom_call.1} parent=5 // pred_fallthru
        _
      %p114 = scmp.lt.s32.totalorder %s12, 2
      // Predicated region
      $region17: #{tpu_custom_call.1} parent=5 // pred_check
        %p115 = pneg %p114
      $region18: #{tpu_custom_call.1} parent=5 // pred_check_branch
        %117 = sbr.rel (%p115) target = $region20
      $region19: #{tpu_custom_call.1} parent=5 // pred_region
        // Predicated region
        $region21: #{tpu_custom_call.1} parent=19 // pred_check
          %p118 = pneg %p32
        $region22: #{tpu_custom_call.1} parent=19 // pred_check_branch
          %120 = sbr.rel (%p118) target = $region24
        $region23: #{tpu_custom_call.1} parent=19 // pred_region
          %s121 = smul.u32 2, %s12
          %p122 = scmp.lt.s32.totalorder %s121, 3
          %s123 = scalar_select %p122, %s121, 3
          %s124 = smul.addr %s123, 8
          %s125 = scalar_lea.vmem %s0, %s124
          %s126 = smul.u32 2, %s12
        $region24: #{tpu_custom_call.1} parent=19 // pred_fallthru
          _
      $region20: #{tpu_custom_call.1} parent=5 // pred_fallthru
        _
      %p127 = scmp.le.s32.totalorder 1, %s12
      %p128 = scmp.lt.s32.totalorder %s12, 3
      %p129 = pnand %p127, %p128
      %p130 = pneg %p129
      // Predicated region
      $region25: #{tpu_custom_call.1} parent=5 // pred_check
        _
      $region26: #{tpu_custom_call.1} parent=5 // pred_check_branch
        %132 = sbr.rel (%p129) target = $region28
      $region27: #{tpu_custom_call.1} parent=5 // pred_region
        %s133 = ssub.s32 %s12, 1
        // Predicated region
        $region29: #{tpu_custom_call.1} parent=27 // pred_check
          %p134 = pneg %p59
        $region30: #{tpu_custom_call.1} parent=27 // pred_check_branch
          %136 = sbr.rel (%p134) target = $region32
        $region31: #{tpu_custom_call.1} parent=27 // pred_region
          %138 = dma.done [#allocation3], 1024
        $region32: #{tpu_custom_call.1} parent=27 // pred_fallthru
          _
        %s139 = smul.u32 2, %s17
        %p140 = scmp.lt.s32.totalorder %s139, 3
        %s141 = scalar_select %p140, %s139, 3
        %s142 = smul.addr %s141, 8
        %s143 = scalar_lea.vmem %s0, %s142
        %p144 = pneg %p38
        %p145 = pneg %p35
        %p146 = pneg %p59
        %p147 = pneg %p56
        %p148 = pneg %p85
        %p149 = pneg %p82
        %s150 = sand.u32 %s72, 1
        %s151 = scalar_lea.sflag [#allocation4], %s150
        %s152 = sand.u32 %s72, 1
        %s153 = smul.addr %s152, 8
        %s154 = scalar_lea.vmem [#allocation5], %s153
        %s155 = smul.u32 2, %s17
        %p156 = scmp.lt.s32.totalorder %s155, 3
        %s157 = scalar_select %p156, %s155, 3
        %s158 = smul.addr %s157, 8
        %s159 = scalar_lea.vmem %s0, %s158
        %s160 = smul.u32 2, %s17
        %s161 = smul.u32 2, %s17
        %v162 = vld [vmem:[%s159] sm:$0xff]
        %v163 = vld [vmem:[%s159 + $0x8] sm:$0xff]
        %v164 = vlaneseq
        %v165 = vand.u32 %v164, 127
        %166 = vset.pattern.permute.xlu0 0
        %167 = vperm.xlu0 %166, %v162
        %v168 = vpop.permute.xlu0 %167
        %169 = vset.pattern.permute.xlu0 0
        %170 = vperm.xlu0 %169, %v163
        %v171 = vpop.permute.xlu0 %170
        %vm172 = vcmp.eq.s32.totalorder %v165, %v168
        %vm173 = vcmp.eq.s32.totalorder %v165, %v171
        %174 = vset.pattern.permute.xlu0 1
        %175 = vperm.xlu0 %174, %v162
        %v176 = vpop.permute.xlu0 %175
        %177 = vset.pattern.permute.xlu0 1
        %178 = vperm.xlu0 %177, %v163
        %v179 = vpop.permute.xlu0 %178
        %vm180 = vcmp.eq.s32.totalorder %v165, %v176
        %vm181 = vcmp.eq.s32.totalorder %v165, %v179
        %vm182 = vmor %vm172, %vm180
        %vm183 = vmor %vm173, %vm181
        %184 = vset.pattern.permute.xlu0 2
        %185 = vperm.xlu0 %184, %v162
        %v186 = vpop.permute.xlu0 %185
        %187 = vset.pattern.permute.xlu0 2
        %188 = vperm.xlu0 %187, %v163
        %v189 = vpop.permute.xlu0 %188
        %vm190 = vcmp.eq.s32.totalorder %v165, %v186
        %vm191 = vcmp.eq.s32.totalorder %v165, %v189
        %vm192 = vmor %vm182, %vm190
        %vm193 = vmor %vm183, %vm191
        %194 = vset.pattern.permute.xlu0 3
        %195 = vperm.xlu0 %194, %v162
        %v196 = vpop.permute.xlu0 %195
        %197 = vset.pattern.permute.xlu0 3
        %198 = vperm.xlu0 %197, %v163
        %v199 = vpop.permute.xlu0 %198
        %vm200 = vcmp.eq.s32.totalorder %v165, %v196
        %vm201 = vcmp.eq.s32.totalorder %v165, %v199
        %vm202 = vmor %vm192, %vm200
        %vm203 = vmor %vm193, %vm201
        %v204 = vsel %vm202, 1, 0
        %v205 = vsel %vm203, 1, 0
        %v206 = vcvt.s32.f32 %v204
        %v207 = vcvt.s32.f32 %v205
        %v208 = vpack.c.bf16 %v207, %v206
        %v209 = vld [vmem:[#allocation2] sm:$0xf]
        %v210 = vld [vmem:[#allocation2 + $0x4] sm:$0xf]
        %v211 = vld [vmem:[#allocation2 + $0x8] sm:$0xf]
        %v212 = vld [vmem:[#allocation2 + $0xc] sm:$0xf]
        %v213 = vld [vmem:[#allocation2 + $0x10] sm:$0xf]
        %v214 = vld [vmem:[#allocation2 + $0x14] sm:$0xf]
        %v215 = vld [vmem:[#allocation2 + $0x18] sm:$0xf]
        %v216 = vld [vmem:[#allocation2 + $0x1c] sm:$0xf]
        %v217 = vld [vmem:[#allocation2 + $0x20] sm:$0xf]
        %v218 = vld [vmem:[#allocation2 + $0x24] sm:$0xf]
        %v219 = vld [vmem:[#allocation2 + $0x28] sm:$0xf]
        %v220 = vld [vmem:[#allocation2 + $0x2c] sm:$0xf]
        %v221 = vld [vmem:[#allocation2 + $0x30] sm:$0xf]
        %v222 = vld [vmem:[#allocation2 + $0x34] sm:$0xf]
        %v223 = vld [vmem:[#allocation2 + $0x38] sm:$0xf]
        %v224 = vld [vmem:[#allocation2 + $0x3c] sm:$0xf]
        %v241 = vunpack.c.l.b16 %v209
        %v242 = vunpack.c.l.b16 %v210
        %v243 = vunpack.c.l.b16 %v211
        %v244 = vunpack.c.l.b16 %v212
        %v245 = vunpack.c.l.b16 %v213
        %v246 = vunpack.c.l.b16 %v214
        %v247 = vunpack.c.l.b16 %v215
        %v248 = vunpack.c.l.b16 %v216
        %v249 = vunpack.c.l.b16 %v217
        %v250 = vunpack.c.l.b16 %v218
        %v251 = vunpack.c.l.b16 %v219
        %v252 = vunpack.c.l.b16 %v220
        %v253 = vunpack.c.l.b16 %v221
        %v254 = vunpack.c.l.b16 %v222
        %v255 = vunpack.c.l.b16 %v223
        %v256 = vunpack.c.l.b16 %v224
        %v257 = vpack.c.b16 %v242, %v241
        %v258 = vpack.c.b16 %v244, %v243
        %v259 = vpack.c.b16 %v246, %v245
        %v260 = vpack.c.b16 %v248, %v247
        %v261 = vpack.c.b16 %v250, %v249
        %v262 = vpack.c.b16 %v252, %v251
        %v263 = vpack.c.b16 %v254, %v253
        %v264 = vpack.c.b16 %v256, %v255
        %273 = vmatpush.bf16.msra.mxu0 %v264
        %274 = vmatpush.bf16.msra.mxu0 %v263
        %275 = vmatpush.bf16.msra.mxu0 %v262
        %276 = vmatpush.bf16.msra.mxu0 %v261
        %277 = vmatpush.bf16.msra.mxu0 %v260
        %278 = vmatpush.bf16.msra.mxu0 %v259
        %279 = vmatpush.bf16.msra.mxu0 %v258
        %280 = vmatpush.bf16.msra.mxu0 %v257
        %281 = vmatmul.bf16.gmra.mxu0 %v208
        %v282 = vpop.f32.mrf.mxu0
        %v283 = vadd.f32 0.0, %v282
        %v284 = vpop.f32.mrf.mxu0
        %v285 = vadd.f32 0.0, %v284
        %286 = vdwg.mxu0
        %v287 = vpack.c.bf16 %v283, %v283
        %v288 = vpack.c.bf16 %v285, %v285
        %289 = vst [vmem:[%s154] sm:$0xf] %v287
        %290 = vst [vmem:[%s154 + $0x4] sm:$0xf] %v288
        %s291 = sand.u32 %s72, 1
        %s292 = scalar_lea.sflag [#allocation4], %s291
        %s293 = sand.u32 %s72, 1
        %s294 = smul.addr %s293, 8
        %s295 = scalar_lea.vmem [#allocation5], %s294
        // Predicated region
        $region33: #{tpu_custom_call.1} parent=27 // pred_check
          %p296 = pneg %p82
        $region34: #{tpu_custom_call.1} parent=27 // pred_check_branch
          %298 = sbr.rel (%p296) target = $region36
        $region35: #{tpu_custom_call.1} parent=27 // pred_region
          %s299 = smul.u32 2, %s17
          %301 = vsyncadd %s292, 0
          %s302 = smul.addr %s299, 4
          %s303 = scalar_lea.hbm %s2, %s302
          %s304 = sshll.u32 %s295, 4
          %s305 = int_to_ptr.vmem [resolvable:$true] %s304
          %s306 = sshll.u32 %s303, 4
          %s307 = int_to_ptr.hbm [resolvable:$true] %s306
          %312 = dma.vmem_to_hbm [thread:$0]  %s305, 128, %s307, %s292, 64, 64, 4
        $region36: #{tpu_custom_call.1} parent=27 // pred_fallthru
          _
      $region28: #{tpu_custom_call.1} parent=5 // pred_fallthru
        _
      %p313 = scmp.le.s32.totalorder 2, %s12
      // Predicated region
      $region37: #{tpu_custom_call.1} parent=5 // pred_check
        %p314 = pneg %p313
      $region38: #{tpu_custom_call.1} parent=5 // pred_check_branch
        %316 = sbr.rel (%p314) target = $region40
      $region39: #{tpu_custom_call.1} parent=5 // pred_region
        %s317 = ssub.s32 %s12, 2
        // Predicated region
        $region41: #{tpu_custom_call.1} parent=39 // pred_check
          %p318 = pneg %p88
        $region42: #{tpu_custom_call.1} parent=39 // pred_check_branch
          %320 = sbr.rel (%p318) target = $region44
        $region43: #{tpu_custom_call.1} parent=39 // pred_region
          %s321 = sand.u32 %s73, 1
          %s322 = scalar_lea.sflag [#allocation4], %s321
          %s323 = sand.u32 %s73, 1
          %s324 = smul.addr %s323, 8
          %s325 = scalar_lea.vmem [#allocation5], %s324
          %327 = dma.done %s322, 128
        $region44: #{tpu_custom_call.1} parent=39 // pred_fallthru
          _
      $region40: #{tpu_custom_call.1} parent=5 // pred_fallthru
        _
    $region6: #{tpu_custom_call.1} parent=1 // loop_footer
      %s16 = sadd.s32 1, %s12
    $region7: #{tpu_custom_call.1} parent=1 // loop_footer_branch
      %11 = sbr.rel target = $region3
    $region8: #{tpu_custom_call.1} parent=1 // loop_exit
      _
    %328 = vsyncpa [#allocation3], 1
    %s329 = scalar_lea.sflag [#allocation3], 1
    %330 = vsyncpa %s329, 1
    %331 = vsyncpa [#allocation4], 1
    %s332 = scalar_lea.sflag [#allocation4], 1
    %333 = vsyncpa %s332, 1

</llo_original>
